<compile_context>
chip_gen: v7x
topology: tpu7x:2x2x1
jax: 0.10.0
libtpu: 0.0.40
codegen_flags: <defaults>
</compile_context>

<pallas_src>
import functools
from typing import NamedTuple, Optional

import jax
import jax.numpy as jnp
from jax import lax
from jax.experimental import pallas as pl
from jax.experimental.pallas import tpu as pltpu

_MIB = 1024 * 1024


# ---------------------------------------------------------------------------
# Planning helpers (generation-aware tiling)
# ---------------------------------------------------------------------------
def _round_up(x, m):
    return ((x + m - 1) // m) * m


def _tpu_vmem_capacity_bytes():
    """Per-core VMEM capacity; conservative 64 MiB (v7x-sized) fallback."""
    try:
        cap = int(getattr(pltpu.get_tpu_info(), "vmem_capacity_bytes", 0))
        if cap > 0:
            return cap
    except Exception:
        pass
    return 64 * _MIB


def _feature_budget_bytes():
    """Bytes allotted to the double-buffered feature K-tiles (per generation)."""
    cap = _tpu_vmem_capacity_bytes()
    if cap >= 96 * _MIB:          # v5e / v6e: 128 MiB VMEM — use it
        return 72 * _MIB
    return 24 * _MIB              # v7x (64 MiB VMEM) and unknown chips


def _default_num_k_splits():
    """2 on chips that expose two TensorCores to a single Pallas program."""
    try:
        kind = jax.devices()[0].device_kind.lower()
    except Exception:
        return 1
    return 2 if any(tag in kind for tag in ("v7", "tpu7", "v4")) else 1


class _Plan(NamedTuple):
    m: int
    k: int
    mp: int
    kp: int
    tk: int
    n_splits: int
    nk: int
    nk_per_split: int
    norm: float
    itemsize: int


def _make_plan(shape, compute_dtype, num_k_splits=None, max_tk=None):
    a, b, c, d = shape
    m, k = a * b, c * d
    itemsize = jnp.dtype(compute_dtype).itemsize

    # Pad M to the sublane pack of the compute dtype (8 f32 / 16 bf16 / 32 i8)
    # so the (mp, tk) blocks and the (mp, mp) accumulator use dense layouts.
    pack = (8 * 4) // itemsize
    mp = _round_up(m, pack)

    # Largest K-tile (multiple of 128 lanes) whose two double-buffered (mp, tk)
    # blocks fit the generation-aware budget.  A large tk also keeps the
    # per-step (mp, mp) accumulator read-modify-write well below the MXU work
    # per step (relevant on v5e's single vector-store slot).
    budget = _feature_budget_bytes()
    tk = budget // (2 * mp * itemsize)
    tk = max(128, (tk // 128) * 128)
    tk = min(tk, _round_up(k, 128))
    if max_tk is not None:
        tk = min(tk, max(128, (int(max_tk) // 128) * 128))

    nk0 = -(-k // tk)
    ns = _default_num_k_splits() if num_k_splits is None else int(num_k_splits)
    ns = max(1, min(ns, nk0))
    kp = _round_up(k, tk * ns)        # zero K-padding is exact for the Gram
    nk = kp // tk
    return _Plan(m, k, mp, kp, tk, ns, nk, nk // ns, float(a * b * c * d), itemsize)


def _pad_features(x, plan, compute_dtype):
    feats = x.reshape(plan.m, plan.k).astype(compute_dtype)
    return jnp.pad(feats, ((0, plan.mp - plan.m), (0, plan.kp - plan.k)))


def _vmem_limit_bytes(plan, num_resident_targets):
    """Count the real resident set and cap by the per-generation capacity."""
    feat = 2 * plan.mp * plan.tk * plan.itemsize          # double-buffered K tiles
    acc = 2 * plan.mp * plan.mp * 4                       # accumulator / output blk
    tgt = num_resident_targets * plan.mp * plan.mp * 4    # resident target Gram
    need = feat + acc + tgt + 4 * _MIB                    # compiler-internal slack
    cap = int(0.9 * _tpu_vmem_capacity_bytes())
    return int(min(max(need, 16 * _MIB), cap))


# ---------------------------------------------------------------------------
# Kernels
# ---------------------------------------------------------------------------
def _gram_accum_kernel(feat_ref, g_ref, *, inv_norm):
    """One K-split's Gram: accumulate feat @ feat.T directly into the
    VMEM-resident output block across the K-tile axis; scale in place at the
    last step (no scratch accumulator, no finalize copy)."""
    k = pl.program_id(1)

    @pl.when(k == 0)
    def _init():
        g_ref[...] = jnp.zeros_like(g_ref)

    f = feat_ref[...]
    g_ref[...] += lax.dot_general(
        f, f,
        dimension_numbers=(((1,), (1,)), ((), ())),   # contract on K — no f.T
        preferred_element_type=jnp.float32,
    )

    @pl.when(k == pl.num_programs(1) - 1)
    def _finalize():
        g_ref[...] = g_ref[...] * inv_norm


def _style_loss_kernel(feat_ref, target_ref, loss_ref, acc_ref, *, inv_norm, inv_count):
    """Single-TensorCore loss path: Gram accumulation in a VMEM scratch, MSE
    against the resident target Gram on the last K step, scalar loss to SMEM
    only (the Gram never returns to HBM)."""
    k = pl.program_id(0)

    @pl.when(k == 0)
    def _init():
        acc_ref[...] = jnp.zeros_like(acc_ref)

    f = feat_ref[...]
    acc_ref[...] += lax.dot_general(
        f, f,
        dimension_numbers=(((1,), (1,)), ((), ())),
        preferred_element_type=jnp.float32,
    )

    @pl.when(k == pl.num_programs(0) - 1)
    def _finalize():
        diff = acc_ref[...] * inv_norm - target_ref[...]
        # Padded rows/cols of both Grams are zero, so summing the padded
        # (Mp, Mp) matrix equals the sum over the true (M, M) region.
        loss_ref[0, 0] = jnp.sum(diff * diff) * inv_count


# ---------------------------------------------------------------------------
# pallas_call wrappers
# ---------------------------------------------------------------------------
def _gram_partials(feats, plan, compute_dtype):
    """(n_splits, Mp, Mp) partial Grams, each already scaled by 1/norm."""
    mp, tk, ns, nk_per = plan.mp, plan.tk, plan.n_splits, plan.nk_per_split
    return pl.pallas_call(
        functools.partial(_gram_accum_kernel, inv_norm=1.0 / plan.norm),
        grid_spec=pltpu.PrefetchScalarGridSpec(
            num_scalar_prefetch=0,
            grid=(ns, nk_per),   # leading axis: one K-split per TensorCore (v7x)
            in_specs=[pl.BlockSpec((mp, tk), lambda s, k: (0, s * nk_per + k))],
            out_specs=pl.BlockSpec((pl.Squeezed(), mp, mp), lambda s, k: (s, 0, 0)),
        ),
        out_shape=jax.ShapeDtypeStruct((ns, mp, mp), jnp.float32),
        compiler_params=pltpu.CompilerParams(
            dimension_semantics=("parallel", "arbitrary"),
            vmem_limit_bytes=_vmem_limit_bytes(plan, num_resident_targets=0),
        ),
        cost_estimate=pl.CostEstimate(
            flops=2 * mp * mp * plan.kp,
            transcendentals=0,
            bytes_accessed=mp * plan.kp * plan.itemsize + ns * mp * mp * 4,
        ),
    )(feats)


def _gram_padded(x, compute_dtype=jnp.bfloat16, num_k_splits=None, max_tk=None):
    """Padded (Mp, Mp) Gram matrix, normalized by a*b*c*d. Returns (G_padded, M)."""
    plan = _make_plan(x.shape, compute_dtype, num_k_splits, max_tk)
    feats = _pad_features(x, plan, compute_dtype)
    partials = _gram_partials(feats, plan, compute_dtype)
    g = jnp.sum(partials, axis=0)      # no-op combine when n_splits == 1
    return g, plan.m


def gram_matrix(x, compute_dtype=jnp.bfloat16, num_k_splits=None, max_tk=None):
    """Pallas equivalent of the PyTorch gram_matrix()."""
    g, m = _gram_padded(x, compute_dtype, num_k_splits, max_tk)
    return g[:m, :m]


def style_loss_forward(x, target_gram_padded, compute_dtype=jnp.bfloat16,
                       *, num_k_splits=None, max_tk=None):
    """Returns (input, loss).  Single-core path emits only an SMEM scalar;
    the multi-core (v7x) path emits per-core partial Grams and combines them
    in a tiny JAX epilogue."""
    plan = _make_plan(x.shape, compute_dtype, num_k_splits, max_tk)
    mp, tk = plan.mp, plan.tk
    assert tuple(target_gram_padded.shape) == (mp, mp), (
        f"target Gram padded to {target_gram_padded.shape}, expected {(mp, mp)} "
        f"(input feature shape must match the target feature shape)")

    feats = _pad_features(x, plan, compute_dtype)
    target = target_gram_padded.astype(jnp.float32)
    inv_norm = 1.0 / plan.norm
    inv_count = 1.0 / float(plan.m * plan.m)

    if plan.n_splits == 1:
        loss = pl.pallas_call(
            functools.partial(_style_loss_kernel, inv_norm=inv_norm, inv_count=inv_count),
            grid_spec=pltpu.PrefetchScalarGridSpec(
                num_scalar_prefetch=0,
                grid=(plan.nk,),
                in_specs=[
                    pl.BlockSpec((mp, tk), lambda i: (0, i)),            # feature K tiles
                    pl.BlockSpec(memory_space=pltpu.MemorySpace.VMEM),   # target: 1 resident copy
                ],
                out_specs=pl.BlockSpec(memory_space=pltpu.MemorySpace.SMEM),
                scratch_shapes=[pltpu.VMEM((mp, mp), jnp.float32)],
            ),
            out_shape=jax.ShapeDtypeStruct((1, 1), jnp.float32),
            compiler_params=pltpu.CompilerParams(
                dimension_semantics=("arbitrary",),
                vmem_limit_bytes=_vmem_limit_bytes(plan, num_resident_targets=1),
            ),
            cost_estimate=pl.CostEstimate(
                flops=2 * mp * mp * plan.kp,
                transcendentals=0,
                bytes_accessed=mp * plan.kp * plan.itemsize + mp * mp * 4 + 4,
            ),
        )(feats, target)
        return x, loss[0, 0]

    # v7x two-TensorCore path: per-core partial Grams + trivial epilogue.
    partials = _gram_partials(feats, plan, compute_dtype)
    g = jnp.sum(partials, axis=0)
    diff = g - target          # padding is zero in both -> exact
    return x, jnp.sum(diff * diff) * inv_count


class StyleLoss:
    """JAX/Pallas mirror of the PyTorch StyleLoss module."""

    def __init__(self, target_feature, compute_dtype=jnp.bfloat16):
        self._compute_dtype = compute_dtype
        self._feature_shape = tuple(target_feature.shape)
        g_padded, m = _gram_padded(target_feature, compute_dtype)
        self._target_padded = g_padded        # fixed (detached) padded buffer
        self.target = g_padded[:m, :m]        # same as PyTorch's self.target
        self.loss = None

    def __call__(self, x):
        assert tuple(x.shape) == self._feature_shape, (
            f"input feature shape {x.shape} != target feature shape {self._feature_shape}")
        out, loss = style_loss_forward(x, self._target_padded, self._compute_dtype)
        self.loss = loss
        return out


# ---------------------------------------------------------------------------
# Main
# ---------------------------------------------------------------------------
if __name__ == "__main__":
    key = jax.random.PRNGKey(0)
    k_tgt, k_in = jax.random.split(key)

    a, b, c, d = 2, 4, 16, 16  # NCHW feature-map shape
    target_feature = jax.random.normal(k_tgt, (a, b, c, d), dtype=jnp.float32)
    x = jax.random.normal(k_in, (a, b, c, d), dtype=jnp.float32)

    def ref_gram(t, dtype=jnp.float32):
        aa, bb, cc, dd = t.shape
        f = t.reshape(aa * bb, cc * dd).astype(dtype).astype(jnp.float32)
        return (f @ f.T) / (aa * bb * cc * dd)

    # 1) default (bf16-streamed) StyleLoss path; reference uses the same cast.
    module = StyleLoss(target_feature)
    out = jax.block_until_ready(module(x))
    loss = jax.block_until_ready(module.loss)
    ref_loss_bf16 = jnp.mean(
        (ref_gram(x, jnp.bfloat16) - ref_gram(target_feature, jnp.bfloat16)) ** 2)
    assert jnp.allclose(loss, ref_loss_bf16, rtol=1e-4, atol=1e-6), (loss, ref_loss_bf16)
    assert jnp.array_equal(out, x)  # forward returns its input unchanged

    # 2) f32 path against the exact PyTorch-equivalent f32 reference.
    module_f32 = StyleLoss(target_feature, compute_dtype=jnp.float32)
    out32 = jax.block_until_ready(module_f32(x))
    loss32 = jax.block_until_ready(module_f32.loss)
    ref_loss_f32 = jnp.mean((ref_gram(x) - ref_gram(target_feature)) ** 2)
    assert jnp.allclose(loss32, ref_loss_f32, rtol=1e-5, atol=1e-6), (loss32, ref_loss_f32)
    assert jnp.array_equal(out32, x)

    # 3) standalone gram_matrix checks (both dtypes).
    g32 = jax.block_until_ready(gram_matrix(x, compute_dtype=jnp.float32))
    assert jnp.allclose(g32, ref_gram(x), rtol=1e-5, atol=1e-6)
    gbf = jax.block_until_ready(gram_matrix(x))
    assert jnp.allclose(gbf, ref_gram(x, jnp.bfloat16), rtol=1e-3, atol=1e-5)

    # 4) exercise the multi-split (v7x two-TensorCore) code path explicitly.
    #    On single-TC chips the "parallel" axis just iterates, so this
    #    validates the split path's correctness on any generation.
    _, loss_split = style_loss_forward(
        x, module_f32._target_padded, compute_dtype=jnp.float32,
        num_k_splits=2, max_tk=128)
    loss_split = jax.block_until_ready(loss_split)
    assert jnp.allclose(loss_split, ref_loss_f32, rtol=1e-5, atol=1e-6), (loss_split, ref_loss_f32)

    g_split = jax.block_until_ready(
        gram_matrix(x, compute_dtype=jnp.float32, num_k_splits=2, max_tk=128))
    assert jnp.allclose(g_split, ref_gram(x), rtol=1e-5, atol=1e-6)

    print("KERNEL_OK")
</pallas_src>

<mosaic_0001>
module attributes {stable_mosaic.version = 11 : i64} {
  func.func @_gram_accum_kernel(%arg0: i32, %arg1: i32, %arg2: memref<16x256xbf16, #tpu.memory_space<vmem>>, %arg3: memref<1x16x16xf32, #tpu.memory_space<vmem>>) attributes {dimension_semantics = [#tpu.dimension_semantics<parallel>, #tpu.dimension_semantics<arbitrary>], iteration_bounds = array<i64: 1, 1>, scalar_prefetch = 0 : i64, scratch_operands = 0 : i64, tpu.core_type = #tpu.core_type<tc>, window_params = [{transform_indices = @transform_0, window_bounds = array<i64: 16, 256>}, {transform_indices = @transform_1, window_bounds = array<i64: 1, 16, 16>}]} {
    %c0_i32 = arith.constant 0 : i32
    %0 = arith.cmpi eq, %arg1, %c0_i32 : i32
    %1 = arith.extui %0 : i1 to i32
    %c0_i32_0 = arith.constant 0 : i32
    %2 = arith.cmpi ne, %1, %c0_i32_0 : i32
    scf.if %2 {
      %cst_10 = arith.constant 0.000000e+00 : f32
      %14 = vector.broadcast %cst_10 : f32 to vector<16x16xf32>
      %c0_11 = arith.constant 0 : index
      %c0_12 = arith.constant 0 : index
      %c0_13 = arith.constant 0 : index
      %15 = vector.load %arg3[%c0_11, %c0_12, %c0_13] : memref<1x16x16xf32, #tpu.memory_space<vmem>>, vector<1x16x16xf32>
      %16 = vector.shape_cast %15 : vector<1x16x16xf32> to vector<16x16xf32>
      %17 = vector.shape_cast %14 : vector<16x16xf32> to vector<1x16x16xf32>
      tpu.vector_store %arg3[%c0_11, %c0_12, %c0_13], %17 {strides = array<i32>} : memref<1x16x16xf32, #tpu.memory_space<vmem>>, vector<1x16x16xf32>,
    } else {
    }
    %c0 = arith.constant 0 : index
    %c0_1 = arith.constant 0 : index
    %3 = vector.load %arg2[%c0, %c0_1] : memref<16x256xbf16, #tpu.memory_space<vmem>>, vector<16x256xbf16>
    %c0_2 = arith.constant 0 : index
    %c0_3 = arith.constant 0 : index
    %c0_4 = arith.constant 0 : index
    %4 = vector.load %arg3[%c0_2, %c0_3, %c0_4] : memref<1x16x16xf32, #tpu.memory_space<vmem>>, vector<1x16x16xf32>
    %5 = vector.shape_cast %4 : vector<1x16x16xf32> to vector<16x16xf32>
    %cst = arith.constant dense<0.000000e+00> : vector<16x16xf32>
    %6 = tpu.matmul %3, %3, %cst {dimension_numbers = #tpu.dot_dimension_numbers<[1], [1], [0], [0], [0, 0, 1, 0], [], []>} : vector<16x256xbf16>, vector<16x256xbf16>, vector<16x16xf32> -> vector<16x16xf32>
    %7 = arith.addf %5, %6 : vector<16x16xf32>
    %c0_5 = arith.constant 0 : index
    %c0_6 = arith.constant 0 : index
    %c0_7 = arith.constant 0 : index
    %8 = vector.load %arg3[%c0_5, %c0_6, %c0_7] : memref<1x16x16xf32, #tpu.memory_space<vmem>>, vector<1x16x16xf32>
    %9 = vector.shape_cast %8 : vector<1x16x16xf32> to vector<16x16xf32>
    %10 = vector.shape_cast %7 : vector<16x16xf32> to vector<1x16x16xf32>
    tpu.vector_store %arg3[%c0_5, %c0_6, %c0_7], %10 {strides = array<i32>} : memref<1x16x16xf32, #tpu.memory_space<vmem>>, vector<1x16x16xf32>,
    %c0_i32_8 = arith.constant 0 : i32
    %11 = arith.cmpi eq, %arg1, %c0_i32_8 : i32
    %12 = arith.extui %11 : i1 to i32
    %c0_i32_9 = arith.constant 0 : i32
    %13 = arith.cmpi ne, %12, %c0_i32_9 : i32
    scf.if %13 {
      %c0_10 = arith.constant 0 : index
      %c0_11 = arith.constant 0 : index
      %c0_12 = arith.constant 0 : index
      %14 = vector.load %arg3[%c0_10, %c0_11, %c0_12] : memref<1x16x16xf32, #tpu.memory_space<vmem>>, vector<1x16x16xf32>
      %15 = vector.shape_cast %14 : vector<1x16x16xf32> to vector<16x16xf32>
      %cst_13 = arith.constant 4.8828125E-4 : f32
      %16 = vector.broadcast %cst_13 : f32 to vector<16x16xf32>
      %17 = arith.mulf %15, %16 : vector<16x16xf32>
      %c0_14 = arith.constant 0 : index
      %c0_15 = arith.constant 0 : index
      %c0_16 = arith.constant 0 : index
      %18 = vector.load %arg3[%c0_14, %c0_15, %c0_16] : memref<1x16x16xf32, #tpu.memory_space<vmem>>, vector<1x16x16xf32>
      %19 = vector.shape_cast %18 : vector<1x16x16xf32> to vector<16x16xf32>
      %20 = vector.shape_cast %17 : vector<16x16xf32> to vector<1x16x16xf32>
      tpu.vector_store %arg3[%c0_14, %c0_15, %c0_16], %20 {strides = array<i32>} : memref<1x16x16xf32, #tpu.memory_space<vmem>>, vector<1x16x16xf32>,
    } else {
    }
    return
  }
  func.func @transform_0(%arg0: i32, %arg1: i32) -> (i32, i32) {
    %c1_i32 = arith.constant 1 : i32
    %0 = arith.muli %arg0, %c1_i32 : i32
    %1 = arith.addi %0, %arg1 : i32
    %c0_i32 = arith.constant 0 : i32
    %c0_i32_0 = arith.constant 0 : i32
    return %c0_i32, %1 : i32, i32
  }
  func.func @transform_1(%arg0: i32, %arg1: i32) -> (i32, i32, i32) {
    %c0_i32 = arith.constant 0 : i32
    %c0_i32_0 = arith.constant 0 : i32
    %c0_i32_1 = arith.constant 0 : i32
    return %arg0, %c0_i32, %c0_i32_0 : i32, i32, i32
  }
}

</mosaic_0001>

<llo_original>
// kernel: tpu_custom_call.1
$region0: #{tpu_custom_call.1}
  #allocation0 [shape = 'u32[]', space=smem, size = 0x4, offset = 0x4, fixed_abs, tag = 'smem constant byte address 0x4 - core index']
  #allocation1 [shape = 'u32[144,128]{1,0:T(1,128)}', space=vmem, size = 0x12000, scoped, tag = 'internal scratch']
  %s0 = inlined_call_operand.hbm [shape: bf16[16,256], index: 0, kind: input, shape index: {}]
  %s1 = inlined_call_operand.hbm [shape: f32[1,16,16], index: 1, kind: output, shape index: {}]
  %s2 = sld [smem:[#allocation0]]
  $region26: #{tpu_custom_call.1} parent=0
    _
  %s4 = ssub.s32 1, %s2
  %s5 = scalar_select 0, %s4, %s2
  $region1: #{tpu_custom_call.1} parent=0
    #allocation2 [shape = 'u8[8192]{0}', space=vmem, size = 0x2000, scoped, tag = 'input window, operand 0, single buffered']
    #allocation3 [shape = 's32[1]{0}', space=sflag, size = 0x4, scoped, tag = 'scoped memory for tpu_custom_call.1']
    #allocation4 [shape = 's32[1]{0}', space=sflag, size = 0x4, scoped, tag = 'scoped memory for tpu_custom_call.1']
    #allocation5 [shape = 'u8[8192]{0}', space=vmem, size = 0x2000, scoped, tag = 'output window, operand 0, single buffered']
    %6 = vsyncpa [#allocation3], 0
    %7 = vsyncpa [#allocation4], 0
    // Predicated region
    $region2: #{tpu_custom_call.1} parent=1 // pred_check
      _
    $region3: #{tpu_custom_call.1} parent=1 // pred_check_branch
      %9 = sbr.rel (0) target = $region5
    $region4: #{tpu_custom_call.1} parent=1 // pred_region
      %s10 = sadd.s32 0, 0
      %s11 = smul.u32 2, %s10
      %s13 = ssub.s32 256, 256
      %14 = vsyncadd [#allocation3], %s13
      %s15 = smul.addr %s11, 64
      %s16 = scalar_lea.hbm %s0, %s15
      %s17 = sshll.u32 [#allocation2], 4
      %s18 = int_to_ptr.vmem [resolvable:$true] %s17
      %23 = dma.hbm_to_vmem [thread:$0]  %s16, 256, %s18, [#allocation3], 128, 128, 8
    $region5: #{tpu_custom_call.1} parent=1 // pred_fallthru
      _
    // Predicated region
    $region6: #{tpu_custom_call.1} parent=1 // pred_check
      _
    $region7: #{tpu_custom_call.1} parent=1 // pred_check_branch
      %25 = sbr.rel (0) target = $region9
    $region8: #{tpu_custom_call.1} parent=1 // pred_region
      %26 = dma.done [#allocation3], 256
    $region9: #{tpu_custom_call.1} parent=1 // pred_fallthru
      _
    %s27 = sadd.s32 0, 0
    %s28 = smul.u32 2, %s27
    %p30 = scmp.eq.s32.totalorder 0, 0
    // Predicated region
    $region10: #{tpu_custom_call.1} parent=1 // pred_check
      %p31 = pneg %p30
    $region11: #{tpu_custom_call.1} parent=1 // pred_check_branch
      %33 = sbr.rel (%p31) target = $region13
    $region12: #{tpu_custom_call.1} parent=1 // pred_region
      %vm34 = vcmask 130048
      %35 = vst.msk [vmem:[#allocation5] sm:$0xff] %vm34, 0.0
      %36 = vst.msk [vmem:[#allocation5 + $0x8] sm:$0xff] %vm34, 0.0
    $region13: #{tpu_custom_call.1} parent=1 // pred_fallthru
      _
    %v37 = vld [vmem:[#allocation2] sm:$0xff]
    %v38 = vld [vmem:[#allocation2 + $0x8] sm:$0xff]
    %v39 = vld [vmem:[#allocation5] sm:$0xff]
    %v40 = vld [vmem:[#allocation5 + $0x8] sm:$0xff]
    %v43 = vunpack.c.l.b16 %v37
    %v44 = vunpack.c.h.b16 %v37
    %v45 = vunpack.c.l.b16 %v38
    %v46 = vunpack.c.h.b16 %v38
    %v47 = vpack.c.b16 %v45, %v43
    %v48 = vpack.c.b16 %v46, %v44
    %51 = vmatprep.subr.bf16.mxu0 %v48
    %52 = vmatpush1.bf16.xpose.msra.mxu0 %v47
    %53 = vmatprep.subr.bf16.mxu0 0
    %54 = vmatpush1.bf16.xpose.msra.mxu0 0
    %55 = vmatprep.subr.bf16.mxu0 0
    %56 = vmatpush1.bf16.xpose.msra.mxu0 0
    %57 = vmatprep.subr.bf16.mxu0 0
    %58 = vmatpush1.bf16.xpose.msra.mxu0 0
    %59 = vmatprep.subr.bf16.mxu0 0
    %60 = vmatpush1.bf16.xpose.msra.mxu0 0
    %61 = vmatprep.subr.bf16.mxu0 0
    %62 = vmatpush1.bf16.xpose.msra.mxu0 0
    %63 = vmatprep.subr.bf16.mxu0 0
    %64 = vmatpush1.bf16.xpose.msra.mxu0 0
    %65 = vmatprep.subr.bf16.mxu0 0
    %66 = vmatpush1.bf16.xpose.msra.mxu0 0
    %67 = vmatprep.subr.bf16.mxu0 0
    %68 = vmatpush1.bf16.xpose.msra.mxu0 0
    %69 = vmatprep.subr.bf16.mxu0 0
    %70 = vmatpush1.bf16.xpose.msra.mxu0 0
    %71 = vmatprep.subr.bf16.mxu0 0
    %72 = vmatpush1.bf16.xpose.msra.mxu0 0
    %73 = vmatprep.subr.bf16.mxu0 0
    %74 = vmatpush1.bf16.xpose.msra.mxu0 0
    %75 = vmatprep.subr.bf16.mxu0 0
    %76 = vmatpush1.bf16.xpose.msra.mxu0 0
    %77 = vmatprep.subr.bf16.mxu0 0
    %78 = vmatpush1.bf16.xpose.msra.mxu0 0
    %79 = vmatprep.subr.bf16.mxu0 0
    %80 = vmatpush1.bf16.xpose.msra.mxu0 0
    %81 = vmatprep.subr.bf16.mxu0 0
    %82 = vmatpush1.bf16.xpose.msra.mxu0 0
    %83 = vmatprep.mubr.bf16.mxu0 %v48
    %84 = vmatmul.mubr.bf16.gmra.mrb[0].mxu0 %v47
    %v85 = vpop.f32.mrb[0].mxu0
    %v86 = vadd.f32 0.0, %v85
    %v87 = vpop.f32.mrb[0].mxu0
    %v88 = vpop.f32.mrb[0].mxu0
    %v89 = vadd.f32 0.0, %v88
    %v90 = vpop.f32.mrb[0].mxu0
    %91 = vdwg.mxu0
    %v92 = vadd.f32 %v39, %v86
    %v93 = vadd.f32 %v40, %v89
    %vm94 = vcmask 130048
    %95 = vst.msk [vmem:[#allocation5] sm:$0xff] %vm94, %v92
    %96 = vst.msk [vmem:[#allocation5 + $0x8] sm:$0xff] %vm94, %v93
    // Predicated region
    $region14: #{tpu_custom_call.1} parent=1 // pred_check
      %p97 = pneg %p30
    $region15: #{tpu_custom_call.1} parent=1 // pred_check_branch
      %99 = sbr.rel (%p97) target = $region17
    $region16: #{tpu_custom_call.1} parent=1 // pred_region
      %v100 = vld [vmem:[#allocation5] sm:$0xff]
      %v101 = vld [vmem:[#allocation5 + $0x8] sm:$0xff]
      %v102 = vmul.f32 %v100, 0.00048828125
      %v103 = vmul.f32 %v101, 0.00048828125
      %104 = vst.msk [vmem:[#allocation5] sm:$0xff] %vm94, %v102
      %105 = vst.msk [vmem:[#allocation5 + $0x8] sm:$0xff] %vm94, %v103
    $region17: #{tpu_custom_call.1} parent=1 // pred_fallthru
      _
    // Predicated region
    $region18: #{tpu_custom_call.1} parent=1 // pred_check
      _
    $region19: #{tpu_custom_call.1} parent=1 // pred_check_branch
      %107 = sbr.rel (0) target = $region21
    $region20: #{tpu_custom_call.1} parent=1 // pred_region
      %s109 = ssub.s32 256, 256
      %110 = vsyncadd [#allocation4], %s109
      %s111 = sshll.u32 [#allocation5], 4
      %s112 = int_to_ptr.vmem [resolvable:$true] %s111
      %117 = dma.vmem_to_hbm [thread:$0]  %s112, 256, %s1, [#allocation4], 128, 128, 8
    $region21: #{tpu_custom_call.1} parent=1 // pred_fallthru
      _
    // Predicated region
    $region22: #{tpu_custom_call.1} parent=1 // pred_check
      _
    $region23: #{tpu_custom_call.1} parent=1 // pred_check_branch
      %119 = sbr.rel (0) target = $region25
    $region24: #{tpu_custom_call.1} parent=1 // pred_region
      %120 = dma.done [#allocation4], 256
    $region25: #{tpu_custom_call.1} parent=1 // pred_fallthru
      _
    %121 = vsyncpa [#allocation3], 1
    %122 = vsyncpa [#allocation4], 1

</llo_original>
